<compile_context>
chip_gen: v7x
topology: tpu7x:2x2x1
jax: 0.10.0
libtpu: 0.0.40
codegen_flags: <defaults>
</compile_context>

<pallas_src>
import functools

import jax
import jax.numpy as jnp
from jax.experimental import pallas as pl
from jax.experimental.pallas import tpu as pltpu

_LANES = 128
# Conservative resident-footprint budget for the gridless (whole-weights-in-VMEM)
# path; leaves headroom even on v7x (64 MiB physical VMEM per TensorCore).
_GRIDLESS_VMEM_BUDGET = 40 << 20


def _round_up(n: int, m: int) -> int:
    return ((n + m - 1) // m) * m


def _nbytes(shape, dtype) -> int:
    n = 1
    for s in shape:
        n *= int(s)
    return n * jnp.dtype(dtype).itemsize


def prepare_class_embedding_params(w1, b1, w2, b2):
    """One-time parameter preprocessing (hoisted out of the per-call forward).

    Zero-pads the embedding dim to a multiple of 128 lanes so every in-kernel
    store is a full-width unmasked `vst`, and reshapes biases to (1, C_pad).
    Padded w1 columns / b1 entries give pre-activation 0, SiLU(0) = 0, and the
    padded w2 rows/cols + b2 entries are 0, so the first C_out output columns
    are bit-identical to the unpadded computation.
    """
    c_in, c_out = w1.shape
    assert b1.shape == (c_out,) and w2.shape == (c_out, c_out) and b2.shape == (c_out,)
    c_pad = _round_up(c_out, _LANES)
    pad = c_pad - c_out
    if pad:
        w1 = jnp.pad(w1, ((0, 0), (0, pad)))
        b1 = jnp.pad(b1, ((0, pad),))
        w2 = jnp.pad(w2, ((0, pad), (0, pad)))
        b2 = jnp.pad(b2, ((0, pad),))
    return w1, b1.reshape(1, c_pad), w2, b2.reshape(1, c_pad)


def _class_embedding_kernel(x_ref, w1_ref, b1_ref, w2_ref, b2_ref, o_ref):
    # Two MXU matmuls + SiLU fused; operands fed to the MXU in native dtype.
    x = x_ref[...]
    h = jnp.dot(x, w1_ref[...], preferred_element_type=jnp.float32)
    h = h + b1_ref[...].astype(jnp.float32)
    h = h * jax.nn.sigmoid(h)                   # SiLU in f32 (VPU + EUP)
    h = h.astype(w2_ref.dtype)                  # native dtype back into the MXU
    out = jnp.dot(h, w2_ref[...], preferred_element_type=jnp.float32)
    out = out + b2_ref[...].astype(jnp.float32)
    o_ref[...] = out.astype(o_ref.dtype)        # lane-dense store (C_pad % 128 == 0)


def class_embedding_forward(class_, w1, b1_2d, w2, b2_2d, *, c_out=None, tile_n=None):
    """class_: (B, C_in). Params must come from prepare_class_embedding_params.

    Returns (B, c_out); when c_out is None or already lane-aligned the padded
    (B, C_pad) result is returned with no extra slice/copy.
    """
    B, C_in = class_.shape
    assert w1.shape[0] == C_in, "class_.shape[1] must equal in_channels"
    C_pad = w1.shape[1]
    if c_out is None:
        c_out = C_pad
    assert 0 < c_out <= C_pad

    # No integer MXU path on v7x: cast int one-hot inputs to the weight dtype.
    if not jnp.issubdtype(class_.dtype, jnp.floating):
        class_ = class_.astype(w1.dtype)
    out_dtype = jnp.result_type(class_.dtype, w1.dtype, w2.dtype)

    in_descr = [(class_.shape, class_.dtype), (w1.shape, w1.dtype),
                (b1_2d.shape, b1_2d.dtype), (w2.shape, w2.dtype),
                (b2_2d.shape, b2_2d.dtype)]
    io_bytes = sum(_nbytes(s, d) for s, d in in_descr) + _nbytes((B, C_pad), out_dtype)

    if tile_n is None:
        # Gridless unless the resident footprint (dominated by w2) threatens VMEM.
        tile_n = 0 if io_bytes <= _GRIDLESS_VMEM_BUDGET else (256 if C_pad % 256 == 0 else 128)

    n_tiles = 1 if tile_n == 0 else C_pad // tile_n
    cost = pl.CostEstimate(
        flops=2 * B * C_in * C_pad * n_tiles + 2 * B * C_pad * C_pad,
        transcendentals=B * C_pad * n_tiles,
        bytes_accessed=io_bytes,
    )
    out_shape = jax.ShapeDtypeStruct((B, C_pad), out_dtype)

    if tile_n == 0:
        # Everything resident in VMEM; no grid, no pipeline prologue.
        limit = None if io_bytes <= (24 << 20) else min(int(io_bytes * 3 // 2), 60 << 20)
        vmem = lambda: pl.BlockSpec(memory_space=pltpu.MemorySpace.VMEM)
        out_padded = pl.pallas_call(
            _class_embedding_kernel,
            out_shape=out_shape,
            in_specs=[vmem() for _ in range(5)],
            out_specs=vmem(),
            compiler_params=pltpu.CompilerParams(vmem_limit_bytes=limit),
            cost_estimate=cost,
        )(class_, w1, b1_2d, w2, b2_2d)
    else:
        assert tile_n % _LANES == 0 and C_pad % tile_n == 0
        # Column-tiled over the output dim: only a (C_pad, tile_n) stripe of w2 is
        # resident per step; h = SiLU(x @ w1 + b1) is recomputed per stripe (cheap
        # for small B), so the column axis is safely marked 'parallel' (megacore).
        tile_bytes = (_nbytes((B, C_in), class_.dtype)
                      + _nbytes((C_in, C_pad), w1.dtype)
                      + _nbytes((1, C_pad), b1_2d.dtype)
                      + 2 * _nbytes((C_pad, tile_n), w2.dtype)
                      + 2 * _nbytes((1, tile_n), b2_2d.dtype)
                      + 2 * _nbytes((B, tile_n), out_dtype))
        limit = None if tile_bytes <= (24 << 20) else min(int(tile_bytes * 3 // 2), 60 << 20)
        out_padded = pl.pallas_call(
            _class_embedding_kernel,
            out_shape=out_shape,
            grid=(C_pad // tile_n,),
            in_specs=[
                pl.BlockSpec((B, C_in), lambda j: (0, 0)),
                pl.BlockSpec((C_in, C_pad), lambda j: (0, 0)),
                pl.BlockSpec((1, C_pad), lambda j: (0, 0)),
                pl.BlockSpec((C_pad, tile_n), lambda j: (0, j)),
                pl.BlockSpec((1, tile_n), lambda j: (0, j)),
            ],
            out_specs=pl.BlockSpec((B, tile_n), lambda j: (0, j)),
            compiler_params=pltpu.CompilerParams(
                dimension_semantics=("parallel",), vmem_limit_bytes=limit),
            cost_estimate=cost,
        )(class_, w1, b1_2d, w2, b2_2d)

    # Only slice when the caller's embedding dim is not already lane-aligned.
    return out_padded if c_out == C_pad else out_padded[:, :c_out]


def _init_params(key, in_channels, out_channels, dtype=jnp.float32):
    # Deterministic synthetic init mimicking nn.Linear (uniform +/- 1/sqrt(fan_in)).
    k1, k2, k3, k4 = jax.random.split(key, 4)
    bound1 = 1.0 / (in_channels ** 0.5)
    bound2 = 1.0 / (out_channels ** 0.5)
    w1 = jax.random.uniform(k1, (in_channels, out_channels), dtype, -bound1, bound1)
    b1 = jax.random.uniform(k2, (out_channels,), dtype, -bound1, bound1)
    w2 = jax.random.uniform(k3, (out_channels, out_channels), dtype, -bound2, bound2)
    b2 = jax.random.uniform(k4, (out_channels,), dtype, -bound2, bound2)
    return w1, b1, w2, b2


def _reference(class_, w1, b1, w2, b2):
    # Pure-JAX reference at highest matmul precision (so the f32 comparison is fair).
    dot = functools.partial(jnp.dot, precision=jax.lax.Precision.HIGHEST)
    h = dot(class_, w1) + b1
    h = h * jax.nn.sigmoid(h)
    return dot(h, w2) + b2


if __name__ == "__main__":
    key = jax.random.PRNGKey(0)
    kx, kp1, kp2 = jax.random.split(key, 3)

    # ---- Case 1: module-sized shapes (B=2, 4 classes, 32-dim embedding) ->
    #      gridless whole-VMEM path, output sliced back to 32 columns.
    in_channels, out_channels, batch = 4, 32, 2
    labels = jax.random.randint(kx, (batch,), 0, in_channels)
    class_ = jax.nn.one_hot(labels, in_channels, dtype=jnp.float32)
    w1, b1, w2, b2 = _init_params(kp1, in_channels, out_channels)
    params = prepare_class_embedding_params(w1, b1, w2, b2)   # one-time, hoisted
    out = class_embedding_forward(class_, *params, c_out=out_channels)
    out = jax.block_until_ready(out)
    ref = _reference(class_, w1, b1, w2, b2)
    assert out.shape == (batch, out_channels)
    assert jnp.allclose(out, ref, atol=1e-4, rtol=1e-4), float(jnp.max(jnp.abs(out - ref)))

    # ---- Case 2: lane-aligned embedding dim, force the column-tiled grid path
    #      (still small; exercises the large-C_out / v7x-VMEM-safe code path).
    out_channels2 = 256
    w1b, b1b, w2b, b2b = _init_params(kp2, in_channels, out_channels2)
    params2 = prepare_class_embedding_params(w1b, b1b, w2b, b2b)
    out2 = class_embedding_forward(class_, *params2, c_out=out_channels2, tile_n=128)
    out2 = jax.block_until_ready(out2)
    ref2 = _reference(class_, w1b, b1b, w2b, b2b)
    assert out2.shape == (batch, out_channels2)
    assert jnp.allclose(out2, ref2, atol=1e-4, rtol=1e-4), float(jnp.max(jnp.abs(out2 - ref2)))

    print("KERNEL_OK")
</pallas_src>

<mosaic_0001>
module attributes {stable_mosaic.version = 11 : i64} {
  func.func @_class_embedding_kernel(%arg0: memref<2x4xf32, #tpu.memory_space<vmem>>, %arg1: memref<4x128xf32, #tpu.memory_space<vmem>>, %arg2: memref<1x128xf32, #tpu.memory_space<vmem>>, %arg3: memref<128x128xf32, #tpu.memory_space<vmem>>, %arg4: memref<1x128xf32, #tpu.memory_space<vmem>>, %arg5: memref<2x128xf32, #tpu.memory_space<vmem>>) attributes {dimension_semantics = [], scalar_prefetch = 0 : i64, scratch_operands = 0 : i64, tpu.core_type = #tpu.core_type<tc>} {
    %c0 = arith.constant 0 : index
    %c0_0 = arith.constant 0 : index
    %0 = vector.load %arg0[%c0, %c0_0] : memref<2x4xf32, #tpu.memory_space<vmem>>, vector<2x4xf32>
    %c0_1 = arith.constant 0 : index
    %c0_2 = arith.constant 0 : index
    %1 = vector.load %arg1[%c0_1, %c0_2] : memref<4x128xf32, #tpu.memory_space<vmem>>, vector<4x128xf32>
    %cst = arith.constant dense<0.000000e+00> : vector<2x128xf32>
    %2 = tpu.matmul %0, %1, %cst {dimension_numbers = #tpu.dot_dimension_numbers<[1], [0], [0], [1], [0, 0, 1, 1], [], []>} : vector<2x4xf32>, vector<4x128xf32>, vector<2x128xf32> -> vector<2x128xf32>
    %c0_3 = arith.constant 0 : index
    %c0_4 = arith.constant 0 : index
    %3 = vector.load %arg2[%c0_3, %c0_4] : memref<1x128xf32, #tpu.memory_space<vmem>>, vector<1x128xf32>
    %4 = vector.broadcast %3 : vector<1x128xf32> to vector<2x128xf32>
    %5 = arith.addf %2, %4 : vector<2x128xf32>
    %6 = arith.negf %5 : vector<2x128xf32>
    %7 = math.exp %6 : vector<2x128xf32>
    %cst_5 = arith.constant 1.000000e+00 : f32
    %8 = vector.broadcast %cst_5 : f32 to vector<2x128xf32>
    %9 = arith.addf %8, %7 : vector<2x128xf32>
    %10 = arith.divf %8, %9 : vector<2x128xf32>
    %11 = arith.mulf %5, %10 : vector<2x128xf32>
    %c0_6 = arith.constant 0 : index
    %c0_7 = arith.constant 0 : index
    %12 = vector.load %arg3[%c0_6, %c0_7] : memref<128x128xf32, #tpu.memory_space<vmem>>, vector<128x128xf32>
    %cst_8 = arith.constant dense<0.000000e+00> : vector<2x128xf32>
    %13 = tpu.matmul %11, %12, %cst_8 {dimension_numbers = #tpu.dot_dimension_numbers<[1], [0], [0], [1], [0, 0, 1, 1], [], []>} : vector<2x128xf32>, vector<128x128xf32>, vector<2x128xf32> -> vector<2x128xf32>
    %c0_9 = arith.constant 0 : index
    %c0_10 = arith.constant 0 : index
    %14 = vector.load %arg4[%c0_9, %c0_10] : memref<1x128xf32, #tpu.memory_space<vmem>>, vector<1x128xf32>
    %15 = vector.broadcast %14 : vector<1x128xf32> to vector<2x128xf32>
    %16 = arith.addf %13, %15 : vector<2x128xf32>
    %c0_11 = arith.constant 0 : index
    %c0_12 = arith.constant 0 : index
    %17 = vector.load %arg5[%c0_11, %c0_12] : memref<2x128xf32, #tpu.memory_space<vmem>>, vector<2x128xf32>
    tpu.vector_store %arg5[%c0_11, %c0_12], %16 {strides = array<i32>} : memref<2x128xf32, #tpu.memory_space<vmem>>, vector<2x128xf32>,
    return
  }
}

</mosaic_0001>

<llo_original>
// kernel: tpu_custom_call.1
$region0: #{tpu_custom_call.1}
  #allocation0 [shape = 'u32[]', space=smem, size = 0x4, offset = 0x4, fixed_abs, tag = 'smem constant byte address 0x4 - core index']
  #allocation1 [shape = 'u32[144,128]{1,0:T(1,128)}', space=vmem, size = 0x12000, scoped, tag = 'internal scratch']
  %s0 = inlined_call_operand.hbm [shape: f32[2,4], index: 0, kind: input, shape index: {}]
  %s1 = inlined_call_operand.hbm [shape: f32[4,128], index: 1, kind: input, shape index: {}]
  %s2 = inlined_call_operand.vmem [shape: f32[1,128], index: 2, kind: input, shape index: {}]
  %s3 = inlined_call_operand.hbm [shape: f32[128,128], index: 3, kind: input, shape index: {}]
  %s4 = inlined_call_operand.vmem [shape: f32[1,128], index: 4, kind: input, shape index: {}]
  %s5 = inlined_call_operand.hbm [shape: f32[2,128], index: 5, kind: output, shape index: {}]
  %s6 = sld [smem:[#allocation0]]
  $region42: #{tpu_custom_call.1} parent=0
    _
  %s8 = ssub.s32 1, %s6
  %s9 = scalar_select 0, %s8, %s6
  $region1: #{tpu_custom_call.1} parent=0
    #allocation2 [shape = 'u8[1024]{0}', space=vmem, size = 0x400, scoped, tag = 'input window, operand 0, single buffered']
    #allocation3 [shape = 's32[1]{0}', space=sflag, size = 0x4, scoped, tag = 'scoped memory for tpu_custom_call.1']
    #allocation4 [shape = 's32[1]{0}', space=sflag, size = 0x4, scoped, tag = 'scoped memory for tpu_custom_call.1']
    #allocation5 [shape = 'u8[2048]{0}', space=vmem, size = 0x800, scoped, tag = 'input window, operand 1, single buffered']
    #allocation6 [shape = 's32[1]{0}', space=sflag, size = 0x4, scoped, tag = 'scoped memory for tpu_custom_call.1']
    #allocation7 [shape = 'u8[65536]{0}', space=vmem, size = 0x10000, scoped, tag = 'input window, operand 3, single buffered']
    #allocation8 [shape = 'u8[1024]{0}', space=vmem, size = 0x400, scoped, tag = 'output window, operand 0, single buffered']
    %10 = vsyncpa [#allocation3], 0
    %11 = vsyncpa [#allocation6], 0
    %12 = vsyncpa [#allocation4], 0
    // Predicated region
    $region2: #{tpu_custom_call.1} parent=1 // pred_check
      _
    $region3: #{tpu_custom_call.1} parent=1 // pred_check_branch
      %14 = sbr.rel (0) target = $region5
    $region4: #{tpu_custom_call.1} parent=1 // pred_region
      %s16 = ssub.s32 32, 32
      %17 = vsyncadd [#allocation3], %s16
      %s19 = sshll.u32 [#allocation2], 4
      %s20 = int_to_ptr.vmem [resolvable:$true] %s19
      %22 = dma.hbm_to_vmem [thread:$0]  %s0, 32, %s20, [#allocation3]
    $region5: #{tpu_custom_call.1} parent=1 // pred_fallthru
      _
    // Predicated region
    $region6: #{tpu_custom_call.1} parent=1 // pred_check
      _
    $region7: #{tpu_custom_call.1} parent=1 // pred_check_branch
      %24 = sbr.rel (0) target = $region9
    $region8: #{tpu_custom_call.1} parent=1 // pred_region
      %s26 = ssub.s32 64, 64
      %27 = vsyncadd [#allocation6], %s26
      %s29 = sshll.u32 [#allocation5], 4
      %s30 = int_to_ptr.vmem [resolvable:$true] %s29
      %32 = dma.hbm_to_vmem [thread:$0]  %s1, 64, %s30, [#allocation6]
    $region9: #{tpu_custom_call.1} parent=1 // pred_fallthru
      _
    // Predicated region
    $region10: #{tpu_custom_call.1} parent=1 // pred_check
      _
    $region11: #{tpu_custom_call.1} parent=1 // pred_check_branch
      %34 = sbr.rel (0) target = $region13
    $region12: #{tpu_custom_call.1} parent=1 // pred_region
      _
    $region13: #{tpu_custom_call.1} parent=1 // pred_fallthru
      _
    // Predicated region
    $region14: #{tpu_custom_call.1} parent=1 // pred_check
      _
    $region15: #{tpu_custom_call.1} parent=1 // pred_check_branch
      %36 = sbr.rel (0) target = $region17
    $region16: #{tpu_custom_call.1} parent=1 // pred_region
      %s38 = ssub.s32 2048, 2048
      %39 = vsyncadd [#allocation6], %s38
      %s40 = sshll.u32 [#allocation7], 4
      %s41 = int_to_ptr.vmem [resolvable:$true] %s40
      %46 = dma.hbm_to_vmem [thread:$0]  %s3, 2048, %s41, [#allocation6], 128, 128, 8
    $region17: #{tpu_custom_call.1} parent=1 // pred_fallthru
      _
    // Predicated region
    $region18: #{tpu_custom_call.1} parent=1 // pred_check
      _
    $region19: #{tpu_custom_call.1} parent=1 // pred_check_branch
      %48 = sbr.rel (0) target = $region21
    $region20: #{tpu_custom_call.1} parent=1 // pred_region
      _
    $region21: #{tpu_custom_call.1} parent=1 // pred_fallthru
      _
    // Predicated region
    $region22: #{tpu_custom_call.1} parent=1 // pred_check
      _
    $region23: #{tpu_custom_call.1} parent=1 // pred_check_branch
      %50 = sbr.rel (0) target = $region25
    $region24: #{tpu_custom_call.1} parent=1 // pred_region
      %51 = dma.done [#allocation3], 32
    $region25: #{tpu_custom_call.1} parent=1 // pred_fallthru
      _
    // Predicated region
    $region26: #{tpu_custom_call.1} parent=1 // pred_check
      _
    $region27: #{tpu_custom_call.1} parent=1 // pred_check_branch
      %53 = sbr.rel (0) target = $region29
    $region28: #{tpu_custom_call.1} parent=1 // pred_region
      %54 = dma.done [#allocation6], 64
    $region29: #{tpu_custom_call.1} parent=1 // pred_fallthru
      _
    // Predicated region
    $region30: #{tpu_custom_call.1} parent=1 // pred_check
      _
    $region31: #{tpu_custom_call.1} parent=1 // pred_check_branch
      %56 = sbr.rel (0) target = $region33
    $region32: #{tpu_custom_call.1} parent=1 // pred_region
      %57 = dma.done [#allocation6], 2048
    $region33: #{tpu_custom_call.1} parent=1 // pred_fallthru
      _
    %v58 = vld [vmem:[#allocation2] sm:$0x3]
    %v59 = vld [vmem:[#allocation5] sm:$0xf]
    %v60 = vld [vmem:[%s2] sm:$0x1]
    %v62 = vlaneseq
    %v63 = vshrl.u32 %v62, 7
    %v64 = vsub.s32 0, %v63
    %v65 = vrot.slane %v60, %v64
    %vm67 = vcmask 31744
    %v69 = vsel %vm67, %v58, 0
    %vm71 = vcmask 1043456
    %v73 = vsel %vm71, %v59, 0
    %75 = vmatprep.subr.mxu0 0.0
    %76 = vmatpush1.msra.mxu0 %v73
    %77 = vmatprep.subr.mxu0 0.0
    %78 = vmatpush1.msra.mxu0 0.0
    %79 = vmatprep.subr.mxu0 0.0
    %80 = vmatpush1.msra.mxu0 0.0
    %81 = vmatprep.subr.mxu0 0.0
    %82 = vmatpush1.msra.mxu0 0.0
    %83 = vmatprep.subr.mxu0 0.0
    %84 = vmatpush1.msra.mxu0 0.0
    %85 = vmatprep.subr.mxu0 0.0
    %86 = vmatpush1.msra.mxu0 0.0
    %87 = vmatprep.subr.mxu0 0.0
    %88 = vmatpush1.msra.mxu0 0.0
    %89 = vmatprep.subr.mxu0 0.0
    %90 = vmatpush1.msra.mxu0 0.0
    %91 = vmatprep.subr.mxu0 0.0
    %92 = vmatpush1.msra.mxu0 0.0
    %93 = vmatprep.subr.mxu0 0.0
    %94 = vmatpush1.msra.mxu0 0.0
    %95 = vmatprep.subr.mxu0 0.0
    %96 = vmatpush1.msra.mxu0 0.0
    %97 = vmatprep.subr.mxu0 0.0
    %98 = vmatpush1.msra.mxu0 0.0
    %99 = vmatprep.subr.mxu0 0.0
    %100 = vmatpush1.msra.mxu0 0.0
    %101 = vmatprep.subr.mxu0 0.0
    %102 = vmatpush1.msra.mxu0 0.0
    %103 = vmatprep.subr.mxu0 0.0
    %104 = vmatpush1.msra.mxu0 0.0
    %105 = vmatprep.subr.mxu0 0.0
    %106 = vmatpush1.msra.mxu0 0.0
    %107 = vmatprep.subr.mxu0 0.0
    %108 = vmatpush1.msra.mxu0 0.0
    %109 = vmatprep.subr.mxu0 0.0
    %110 = vmatpush1.msra.mxu0 0.0
    %111 = vmatprep.subr.mxu0 0.0
    %112 = vmatpush1.msra.mxu0 0.0
    %113 = vmatprep.subr.mxu0 0.0
    %114 = vmatpush1.msra.mxu0 0.0
    %115 = vmatprep.subr.mxu0 0.0
    %116 = vmatpush1.msra.mxu0 0.0
    %117 = vmatprep.subr.mxu0 0.0
    %118 = vmatpush1.msra.mxu0 0.0
    %119 = vmatprep.subr.mxu0 0.0
    %120 = vmatpush1.msra.mxu0 0.0
    %121 = vmatprep.subr.mxu0 0.0
    %122 = vmatpush1.msra.mxu0 0.0
    %123 = vmatprep.subr.mxu0 0.0
    %124 = vmatpush1.msra.mxu0 0.0
    %125 = vmatprep.subr.mxu0 0.0
    %126 = vmatpush1.msra.mxu0 0.0
    %127 = vmatprep.subr.mxu0 0.0
    %128 = vmatpush1.msra.mxu0 0.0
    %129 = vmatprep.subr.mxu0 0.0
    %130 = vmatpush1.msra.mxu0 0.0
    %131 = vmatprep.subr.mxu0 0.0
    %132 = vmatpush1.msra.mxu0 0.0
    %133 = vmatprep.subr.mxu0 0.0
    %134 = vmatpush1.msra.mxu0 0.0
    %135 = vmatprep.subr.mxu0 0.0
    %136 = vmatpush1.msra.mxu0 0.0
    %137 = vmatprep.subr.mxu0 0.0
    %138 = vmatpush1.msra.mxu0 0.0
    %139 = vmatprep.mubr.f32.mxu0 0.0
    %140 = vmatmul.mubr.f32.gmra.mrb[0].mxu0 %v69
    %v141 = vpop.f32.mrb[0].mxu0
    %v142 = vadd.f32 %v65, %v141
    %v143 = vpop.f32.mrb[0].mxu0
    %144 = vdwg.mxu0
    %v145 = vxor.u32 %v142, 2147483648
    %v146 = vmul.f32 %v145, 1.442695
    %v147 = vpow.pop %v146
    %v148 = vadd.f32 %v147, 1.0
    %v149 = vrcp.pop %v148
    %v150 = vmul.f32 1.0, %v149
    %v151 = vmul.f32 %v142, %v150
    %v152 = vld [vmem:[#allocation7] sm:$0xff]
    %v153 = vld [vmem:[#allocation7 + $0x8] sm:$0xff]
    %v154 = vld [vmem:[#allocation7 + $0x10] sm:$0xff]
    %v155 = vld [vmem:[#allocation7 + $0x18] sm:$0xff]
    %v156 = vld [vmem:[#allocation7 + $0x20] sm:$0xff]
    %v157 = vld [vmem:[#allocation7 + $0x28] sm:$0xff]
    %v158 = vld [vmem:[#allocation7 + $0x30] sm:$0xff]
    %v159 = vld [vmem:[#allocation7 + $0x38] sm:$0xff]
    %v160 = vld [vmem:[#allocation7 + $0x40] sm:$0xff]
    %v161 = vld [vmem:[#allocation7 + $0x48] sm:$0xff]
    %v162 = vld [vmem:[#allocation7 + $0x50] sm:$0xff]
    %v163 = vld [vmem:[#allocation7 + $0x58] sm:$0xff]
    %v164 = vld [vmem:[#allocation7 + $0x60] sm:$0xff]
    %v165 = vld [vmem:[#allocation7 + $0x68] sm:$0xff]
    %v166 = vld [vmem:[#allocation7 + $0x70] sm:$0xff]
    %v167 = vld [vmem:[#allocation7 + $0x78] sm:$0xff]
    %v168 = vld [vmem:[%s4] sm:$0x1]
    %v170 = vlaneseq
    %v171 = vshrl.u32 %v170, 7
    %v172 = vsub.s32 0, %v171
    %v173 = vrot.slane %v168, %v172
    %175 = vmatprep.subr.mxu0 0.0
    %176 = vmatpush1.msra.mxu0 %v152
    %177 = vmatprep.subr.mxu0 0.0
    %178 = vmatpush1.msra.mxu0 %v153
    %179 = vmatprep.subr.mxu0 0.0
    %180 = vmatpush1.msra.mxu0 %v154
    %181 = vmatprep.subr.mxu0 0.0
    %182 = vmatpush1.msra.mxu0 %v155
    %183 = vmatprep.subr.mxu0 0.0
    %184 = vmatpush1.msra.mxu0 %v156
    %185 = vmatprep.subr.mxu0 0.0
    %186 = vmatpush1.msra.mxu0 %v157
    %187 = vmatprep.subr.mxu0 0.0
    %188 = vmatpush1.msra.mxu0 %v158
    %189 = vmatprep.subr.mxu0 0.0
    %190 = vmatpush1.msra.mxu0 %v159
    %191 = vmatprep.subr.mxu0 0.0
    %192 = vmatpush1.msra.mxu0 %v160
    %193 = vmatprep.subr.mxu0 0.0
    %194 = vmatpush1.msra.mxu0 %v161
    %195 = vmatprep.subr.mxu0 0.0
    %196 = vmatpush1.msra.mxu0 %v162
    %197 = vmatprep.subr.mxu0 0.0
    %198 = vmatpush1.msra.mxu0 %v163
    %199 = vmatprep.subr.mxu0 0.0
    %200 = vmatpush1.msra.mxu0 %v164
    %201 = vmatprep.subr.mxu0 0.0
    %202 = vmatpush1.msra.mxu0 %v165
    %203 = vmatprep.subr.mxu0 0.0
    %204 = vmatpush1.msra.mxu0 %v166
    %205 = vmatprep.subr.mxu0 0.0
    %206 = vmatpush1.msra.mxu0 %v167
    %207 = vmatprep.subr.mxu0 0.0
    %208 = vmatpush1.msra.mxu0 0.0
    %209 = vmatprep.subr.mxu0 0.0
    %210 = vmatpush1.msra.mxu0 0.0
    %211 = vmatprep.subr.mxu0 0.0
    %212 = vmatpush1.msra.mxu0 0.0
    %213 = vmatprep.subr.mxu0 0.0
    %214 = vmatpush1.msra.mxu0 0.0
    %215 = vmatprep.subr.mxu0 0.0
    %216 = vmatpush1.msra.mxu0 0.0
    %217 = vmatprep.subr.mxu0 0.0
    %218 = vmatpush1.msra.mxu0 0.0
    %219 = vmatprep.subr.mxu0 0.0
    %220 = vmatpush1.msra.mxu0 0.0
    %221 = vmatprep.subr.mxu0 0.0
    %222 = vmatpush1.msra.mxu0 0.0
    %223 = vmatprep.subr.mxu0 0.0
    %224 = vmatpush1.msra.mxu0 0.0
    %225 = vmatprep.subr.mxu0 0.0
    %226 = vmatpush1.msra.mxu0 0.0
    %227 = vmatprep.subr.mxu0 0.0
    %228 = vmatpush1.msra.mxu0 0.0
    %229 = vmatprep.subr.mxu0 0.0
    %230 = vmatpush1.msra.mxu0 0.0
    %231 = vmatprep.subr.mxu0 0.0
    %232 = vmatpush1.msra.mxu0 0.0
    %233 = vmatprep.subr.mxu0 0.0
    %234 = vmatpush1.msra.mxu0 0.0
    %235 = vmatprep.subr.mxu0 0.0
    %236 = vmatpush1.msra.mxu0 0.0
    %237 = vmatprep.subr.mxu0 0.0
    %238 = vmatpush1.msra.mxu0 0.0
    %239 = vmatprep.mubr.f32.mxu0 0.0
    %240 = vmatmul.mubr.f32.gmra.mrb[0].mxu0 %v151
    %v241 = vpop.f32.mrb[0].mxu0
    %v242 = vadd.f32 %v173, %v241
    %v243 = vpop.f32.mrb[0].mxu0
    %244 = vdwg.mxu0
    %245 = vst [vmem:[#allocation8] sm:$0x3] %v242
    // Predicated region
    $region34: #{tpu_custom_call.1} parent=1 // pred_check
      _
    $region35: #{tpu_custom_call.1} parent=1 // pred_check_branch
      %247 = sbr.rel (0) target = $region37
    $region36: #{tpu_custom_call.1} parent=1 // pred_region
      %s249 = ssub.s32 32, 32
      %250 = vsyncadd [#allocation4], %s249
      %s252 = sshll.u32 [#allocation8], 4
      %s253 = int_to_ptr.vmem [resolvable:$true] %s252
      %255 = dma.vmem_to_hbm [thread:$0]  %s253, 32, %s5, [#allocation4]
    $region37: #{tpu_custom_call.1} parent=1 // pred_fallthru
      _
    // Predicated region
    $region38: #{tpu_custom_call.1} parent=1 // pred_check
      _
    $region39: #{tpu_custom_call.1} parent=1 // pred_check_branch
      %257 = sbr.rel (0) target = $region41
    $region40: #{tpu_custom_call.1} parent=1 // pred_region
      %258 = dma.done [#allocation4], 32
    $region41: #{tpu_custom_call.1} parent=1 // pred_fallthru
      _
    %259 = vsyncpa [#allocation3], 1
    %260 = vsyncpa [#allocation6], 1
    %261 = vsyncpa [#allocation4], 1

</llo_original>
